<compile_context>
chip_gen: v7x
topology: tpu7x:2x2x1
jax: 0.10.0
libtpu: 0.0.40
codegen_flags: <defaults>
</compile_context>

<pallas_src>
import jax
import jax.numpy as jnp
from jax.experimental import pallas as pl
from jax.experimental.pallas import tpu as pltpu

LANE = 128
LARGE_BATCH_BF16 = 4096  # above this, stream x / weights as bf16


def mlp_kernel(x_ref, w1_ref, b1_ref, w2_ref, b2_ref, o_ref):
    # Fused hot path: both matmuls, bias adds and ReLU in one kernel body.
    h = jnp.dot(x_ref[...], w1_ref[...], preferred_element_type=jnp.float32)
    h = jnp.maximum(h + b1_ref[...], 0.0)      # (block_m,Hp) + (1,Hp): in-kernel bcast
    # Dropout (eval mode) == identity.
    # TODO(synk): training-mode dropout mask via pltpu.prng_random_bits if ever needed.
    out = jnp.dot(h.astype(w2_ref.dtype), w2_ref[...],
                  preferred_element_type=jnp.float32)
    o_ref[...] = (out + b2_ref[...]).astype(o_ref.dtype)   # (1,C) bcast over rows


def advanced_model_forward(x, w1, b1, w2, b2, *, block_m=None, compute_dtype=None):
    """x: [B, D] f32; w1: [D, H]; b1: [H]; w2: [H, C]; b2: [C] -> [B, C] f32."""
    B, D = x.shape
    H = w1.shape[1]
    C = w2.shape[1]

    # Streaming dtype: bf16 halves x bytes (kernel is x-bandwidth-bound at large B)
    # while the MXU still accumulates in f32. Small batches keep f32 numerics.
    if compute_dtype is None:
        cdt = jnp.bfloat16 if B >= LARGE_BATCH_BF16 else x.dtype
    else:
        cdt = compute_dtype
    in_itemsize = jnp.dtype(cdt).itemsize
    row_align = 16 if jnp.dtype(cdt) == jnp.dtype(jnp.bfloat16) else 8

    # Hidden-dim pad 64 -> 128: lane-dense h / bias-add / ReLU. Exact: the padded
    # columns are zero after ReLU and multiply zero rows of the padded W2.
    Hp = pl.cdiv(H, LANE) * LANE

    xc = x.astype(cdt)
    w1p = jnp.pad(w1, ((0, 0), (0, Hp - H))).astype(cdt)                 # (D, Hp)
    b1p = jnp.pad(b1, (0, Hp - H)).astype(jnp.float32)[None, :]          # (1, Hp)
    w2p = jnp.pad(w2, ((0, Hp - H), (0, 0))).astype(cdt)                 # (Hp, C)
    b2r = b2.astype(jnp.float32)[None, :]                                # (1, C)

    if block_m is None:
        if B <= 4096:
            # Single grid step: no per-step overhead, no batch padding/slicing.
            block_m = B
        else:
            # Big tiles; the trailing partial block is masked by Pallas.
            block_m = min(8192, pl.cdiv(B, row_align) * row_align)
    block_m = min(block_m, max(B, row_align))

    num_steps = pl.cdiv(B, block_m)
    grid = (num_steps,)

    # x stream spec; deepen the pipeline only when there are many small steps.
    if num_steps >= 4:
        x_spec = pl.BlockSpec((block_m, D), lambda i: (i, 0),
                              pipeline_mode=pl.Buffered(3))
    else:
        x_spec = pl.BlockSpec((block_m, D), lambda i: (i, 0))

    cost = pl.CostEstimate(
        flops=2 * B * D * H + 2 * B * H * C,
        transcendentals=0,
        bytes_accessed=(B * D * in_itemsize          # x in
                        + D * Hp * in_itemsize       # w1
                        + Hp * C * in_itemsize       # w2
                        + (Hp + C) * 4               # biases
                        + B * C * 4),                # out
    )

    # Only raise the scoped-VMEM limit when big tiles actually need it
    # (v5e default ~16 MiB; v6e/v7x ~32 MiB).
    vmem_est = (2 * block_m * D * in_itemsize        # x, double-buffered
                + 2 * block_m * LANE * 4             # out tile (lane-padded layout), 2 bufs
                + 2 * block_m * Hp * 4               # intermediate h headroom
                + (D * Hp + Hp * C) * in_itemsize + (Hp + C) * 4)
    cp_kwargs = dict(dimension_semantics=("parallel",))
    if vmem_est > 12 * 1024 * 1024:
        cp_kwargs["vmem_limit_bytes"] = min(int(2 * vmem_est), 56 * 1024 * 1024)

    out = pl.pallas_call(
        mlp_kernel,
        out_shape=jax.ShapeDtypeStruct((B, C), jnp.float32),
        grid=grid,
        in_specs=[
            x_spec,                                          # x tile over batch
            pl.BlockSpec((D, Hp), lambda i: (0, 0)),         # w1 resident
            pl.BlockSpec((1, Hp), lambda i: (0, 0)),         # b1 (raw) resident
            pl.BlockSpec((Hp, C), lambda i: (0, 0)),         # w2 resident
            pl.BlockSpec((1, C), lambda i: (0, 0)),          # b2 (raw) resident
        ],
        out_specs=pl.BlockSpec((block_m, C), lambda i: (i, 0)),
        compiler_params=pltpu.CompilerParams(**cp_kwargs),
        cost_estimate=cost,
    )(xc, w1p, b1p, w2p, b2r)

    return out


if __name__ == "__main__":
    # Small, self-consistent shapes: input_dim (vectorizer vocab size) = 32,
    # hidden1 = 64 (from the module), num_classes = 3.
    # B=100 is deliberately not a multiple of 8 to exercise the "block = full
    # array dim" single-step path.
    B, D, H, C = 100, 32, 64, 3

    key = jax.random.PRNGKey(0)
    kx, kw1, kb1, kw2, kb2 = jax.random.split(key, 5)

    x = jax.random.normal(kx, (B, D), dtype=jnp.float32)

    # Deterministic parameter init (PyTorch Linear-like uniform bounds),
    # stored pre-transposed as [in, out].
    bound1 = 1.0 / jnp.sqrt(D)
    w1 = jax.random.uniform(kw1, (D, H), minval=-bound1, maxval=bound1, dtype=jnp.float32)
    b1 = jax.random.uniform(kb1, (H,), minval=-bound1, maxval=bound1, dtype=jnp.float32)

    bound2 = 1.0 / jnp.sqrt(H)
    w2 = jax.random.uniform(kw2, (H, C), minval=-bound2, maxval=bound2, dtype=jnp.float32)
    b2 = jax.random.uniform(kb2, (C,), minval=-bound2, maxval=bound2, dtype=jnp.float32)

    out = advanced_model_forward(x, w1, b1, w2, b2)
    out = jax.block_until_ready(out)

    # Cross-check against plain JAX reference (f32 path -> tight tolerance).
    ref = jnp.maximum(x @ w1 + b1, 0.0) @ w2 + b2
    assert out.shape == (B, C)
    assert jnp.allclose(out, ref, atol=1e-5, rtol=1e-5)

    print("KERNEL_OK")
</pallas_src>

<mosaic_0001>
module attributes {stable_mosaic.version = 11 : i64} {
  func.func @mlp_kernel(%arg0: i32, %arg1: memref<100x32xf32, #tpu.memory_space<vmem>>, %arg2: memref<32x128xf32, #tpu.memory_space<vmem>>, %arg3: memref<1x128xf32, #tpu.memory_space<vmem>>, %arg4: memref<128x3xf32, #tpu.memory_space<vmem>>, %arg5: memref<1x3xf32, #tpu.memory_space<vmem>>, %arg6: memref<100x3xf32, #tpu.memory_space<vmem>>) attributes {dimension_semantics = [#tpu.dimension_semantics<parallel>], iteration_bounds = array<i64: 1>, scalar_prefetch = 0 : i64, scratch_operands = 0 : i64, tpu.core_type = #tpu.core_type<tc>, window_params = [{transform_indices = @transform_0, window_bounds = array<i64: 100, 32>}, {pipeline_mode = #tpu.pipeline_mode<synchronous>, transform_indices = @transform_1, window_bounds = array<i64: 32, 128>}, {pipeline_mode = #tpu.pipeline_mode<synchronous>, transform_indices = @transform_2, window_bounds = array<i64: 1, 128>}, {pipeline_mode = #tpu.pipeline_mode<synchronous>, transform_indices = @transform_3, window_bounds = array<i64: 128, 3>}, {pipeline_mode = #tpu.pipeline_mode<synchronous>, transform_indices = @transform_4, window_bounds = array<i64: 1, 3>}, {transform_indices = @transform_5, window_bounds = array<i64: 100, 3>}]} {
    %c0 = arith.constant 0 : index
    %c0_0 = arith.constant 0 : index
    %0 = vector.load %arg1[%c0, %c0_0] : memref<100x32xf32, #tpu.memory_space<vmem>>, vector<100x32xf32>
    %c0_1 = arith.constant 0 : index
    %c0_2 = arith.constant 0 : index
    %1 = vector.load %arg2[%c0_1, %c0_2] : memref<32x128xf32, #tpu.memory_space<vmem>>, vector<32x128xf32>
    %cst = arith.constant dense<0.000000e+00> : vector<100x128xf32>
    %2 = tpu.matmul %0, %1, %cst {dimension_numbers = #tpu.dot_dimension_numbers<[1], [0], [0], [1], [0, 0, 1, 1], [], []>} : vector<100x32xf32>, vector<32x128xf32>, vector<100x128xf32> -> vector<100x128xf32>
    %c0_3 = arith.constant 0 : index
    %c0_4 = arith.constant 0 : index
    %3 = vector.load %arg3[%c0_3, %c0_4] : memref<1x128xf32, #tpu.memory_space<vmem>>, vector<1x128xf32>
    %4 = vector.broadcast %3 : vector<1x128xf32> to vector<100x128xf32>
    %5 = arith.addf %2, %4 : vector<100x128xf32>
    %cst_5 = arith.constant 0.000000e+00 : f32
    %6 = vector.broadcast %cst_5 : f32 to vector<100x128xf32>
    %7 = arith.maximumf %5, %6 : vector<100x128xf32>
    %c0_6 = arith.constant 0 : index
    %c0_7 = arith.constant 0 : index
    %8 = vector.load %arg4[%c0_6, %c0_7] : memref<128x3xf32, #tpu.memory_space<vmem>>, vector<128x3xf32>
    %cst_8 = arith.constant dense<0.000000e+00> : vector<100x3xf32>
    %9 = tpu.matmul %7, %8, %cst_8 {dimension_numbers = #tpu.dot_dimension_numbers<[1], [0], [0], [1], [0, 0, 1, 1], [], []>} : vector<100x128xf32>, vector<128x3xf32>, vector<100x3xf32> -> vector<100x3xf32>
    %c0_9 = arith.constant 0 : index
    %c0_10 = arith.constant 0 : index
    %10 = vector.load %arg5[%c0_9, %c0_10] : memref<1x3xf32, #tpu.memory_space<vmem>>, vector<1x3xf32>
    %11 = vector.broadcast %10 : vector<1x3xf32> to vector<100x3xf32>
    %12 = arith.addf %9, %11 : vector<100x3xf32>
    %c0_11 = arith.constant 0 : index
    %c0_12 = arith.constant 0 : index
    %13 = vector.load %arg6[%c0_11, %c0_12] : memref<100x3xf32, #tpu.memory_space<vmem>>, vector<100x3xf32>
    tpu.vector_store %arg6[%c0_11, %c0_12], %12 {strides = array<i32>} : memref<100x3xf32, #tpu.memory_space<vmem>>, vector<100x3xf32>,
    return
  }
  func.func @transform_0(%arg0: i32) -> (i32, i32) {
    %c0_i32 = arith.constant 0 : i32
    %c0_i32_0 = arith.constant 0 : i32
    return %arg0, %c0_i32 : i32, i32
  }
  func.func @transform_1(%arg0: i32) -> (i32, i32) {
    %c0_i32 = arith.constant 0 : i32
    %c0_i32_0 = arith.constant 0 : i32
    %c0_i32_1 = arith.constant 0 : i32
    return %c0_i32, %c0_i32_0 : i32, i32
  }
  func.func @transform_2(%arg0: i32) -> (i32, i32) {
    %c0_i32 = arith.constant 0 : i32
    %c0_i32_0 = arith.constant 0 : i32
    %c0_i32_1 = arith.constant 0 : i32
    return %c0_i32, %c0_i32_0 : i32, i32
  }
  func.func @transform_3(%arg0: i32) -> (i32, i32) {
    %c0_i32 = arith.constant 0 : i32
    %c0_i32_0 = arith.constant 0 : i32
    %c0_i32_1 = arith.constant 0 : i32
    return %c0_i32, %c0_i32_0 : i32, i32
  }
  func.func @transform_4(%arg0: i32) -> (i32, i32) {
    %c0_i32 = arith.constant 0 : i32
    %c0_i32_0 = arith.constant 0 : i32
    %c0_i32_1 = arith.constant 0 : i32
    return %c0_i32, %c0_i32_0 : i32, i32
  }
  func.func @transform_5(%arg0: i32) -> (i32, i32) {
    %c0_i32 = arith.constant 0 : i32
    %c0_i32_0 = arith.constant 0 : i32
    return %arg0, %c0_i32 : i32, i32
  }
}

</mosaic_0001>

<llo_original>
// kernel: tpu_custom_call.1
$region0: #{tpu_custom_call.1}
  #allocation0 [shape = 'u32[]', space=smem, size = 0x4, offset = 0x4, fixed_abs, tag = 'smem constant byte address 0x4 - core index']
  #allocation1 [shape = 'u32[144,128]{1,0:T(1,128)}', space=vmem, size = 0x12000, scoped, tag = 'internal scratch']
  %s0 = inlined_call_operand.vmem [shape: f32[100,32], index: 0, kind: input, shape index: {}]
  %s1 = inlined_call_operand.vmem [shape: f32[32,128], index: 1, kind: input, shape index: {}]
  %s2 = inlined_call_operand.vmem [shape: f32[1,128], index: 2, kind: input, shape index: {}]
  %s3 = inlined_call_operand.vmem [shape: f32[128,3], index: 3, kind: input, shape index: {}]
  %s4 = inlined_call_operand.vmem [shape: f32[1,3], index: 4, kind: input, shape index: {}]
  %s5 = inlined_call_operand.vmem [shape: f32[100,3], index: 5, kind: output, shape index: {}]
  %s6 = sld [smem:[#allocation0]]
  $region30: #{tpu_custom_call.1} parent=0
    _
  %s8 = ssub.s32 1, %s6
  %s9 = scalar_select 0, %s8, %s6
  // Predicated region
  $region2: #{tpu_custom_call.1} parent=0 // pred_check
    _
  $region3: #{tpu_custom_call.1} parent=0 // pred_check_branch
    %11 = sbr.rel (0) target = $region5
  $region4: #{tpu_custom_call.1} parent=0 // pred_region
    _
  $region5: #{tpu_custom_call.1} parent=0 // pred_fallthru
    _
  // Predicated region
  $region6: #{tpu_custom_call.1} parent=0 // pred_check
    _
  $region7: #{tpu_custom_call.1} parent=0 // pred_check_branch
    %13 = sbr.rel (0) target = $region9
  $region8: #{tpu_custom_call.1} parent=0 // pred_region
    _
  $region9: #{tpu_custom_call.1} parent=0 // pred_fallthru
    _
  // Predicated region
  $region10: #{tpu_custom_call.1} parent=0 // pred_check
    _
  $region11: #{tpu_custom_call.1} parent=0 // pred_check_branch
    %15 = sbr.rel (0) target = $region13
  $region12: #{tpu_custom_call.1} parent=0 // pred_region
    _
  $region13: #{tpu_custom_call.1} parent=0 // pred_fallthru
    _
  // Predicated region
  $region14: #{tpu_custom_call.1} parent=0 // pred_check
    _
  $region15: #{tpu_custom_call.1} parent=0 // pred_check_branch
    %17 = sbr.rel (0) target = $region17
  $region16: #{tpu_custom_call.1} parent=0 // pred_region
    _
  $region17: #{tpu_custom_call.1} parent=0 // pred_fallthru
    _
  // Predicated region
  $region18: #{tpu_custom_call.1} parent=0 // pred_check
    _
  $region19: #{tpu_custom_call.1} parent=0 // pred_check_branch
    %19 = sbr.rel (0) target = $region21
  $region20: #{tpu_custom_call.1} parent=0 // pred_region
    _
  $region21: #{tpu_custom_call.1} parent=0 // pred_fallthru
    _
  %v20 = vld [vmem:[%s0] sm:$0xff]
  %v21 = vld [vmem:[%s0 + $0x8] sm:$0xff]
  %v22 = vld [vmem:[%s0 + $0x10] sm:$0xff]
  %v23 = vld [vmem:[%s0 + $0x18] sm:$0xff]
  %v24 = vld [vmem:[%s0 + $0x20] sm:$0xff]
  %v25 = vld [vmem:[%s0 + $0x28] sm:$0xff]
  %v26 = vld [vmem:[%s0 + $0x30] sm:$0xff]
  %v27 = vld [vmem:[%s0 + $0x38] sm:$0xff]
  %v28 = vld [vmem:[%s0 + $0x40] sm:$0xff]
  %v29 = vld [vmem:[%s0 + $0x48] sm:$0xff]
  %v30 = vld [vmem:[%s0 + $0x50] sm:$0xff]
  %v31 = vld [vmem:[%s0 + $0x58] sm:$0xff]
  %v32 = vld [vmem:[%s0 + $0x60] sm:$0xf]
  %v33 = vld [vmem:[%s1] sm:$0xff]
  %v34 = vld [vmem:[%s1 + $0x8] sm:$0xff]
  %v35 = vld [vmem:[%s1 + $0x10] sm:$0xff]
  %v36 = vld [vmem:[%s1 + $0x18] sm:$0xff]
  %v37 = vld [vmem:[%s2] sm:$0x1]
  %v39 = vlaneseq
  %v40 = vshrl.u32 %v39, 7
  %v41 = vsub.s32 0, %v40
  %v42 = vrot.slane %v37, %v41
  %vm44 = vcmask 261120
  %v46 = vsel %vm44, %v20, 0
  %v49 = vsel %vm44, %v21, 0
  %v52 = vsel %vm44, %v22, 0
  %v55 = vsel %vm44, %v23, 0
  %v58 = vsel %vm44, %v24, 0
  %v61 = vsel %vm44, %v25, 0
  %v64 = vsel %vm44, %v26, 0
  %v67 = vsel %vm44, %v27, 0
  %v70 = vsel %vm44, %v28, 0
  %v73 = vsel %vm44, %v29, 0
  %v76 = vsel %vm44, %v30, 0
  %v79 = vsel %vm44, %v31, 0
  %v82 = vsel %vm44, %v32, 0
  %84 = vmatprep.subr.mxu0 0.0
  %85 = vmatpush1.msra.mxu0 %v33
  %86 = vmatprep.subr.mxu0 0.0
  %87 = vmatpush1.msra.mxu0 %v34
  %88 = vmatprep.subr.mxu0 0.0
  %89 = vmatpush1.msra.mxu0 %v35
  %90 = vmatprep.subr.mxu0 0.0
  %91 = vmatpush1.msra.mxu0 %v36
  %92 = vmatprep.subr.mxu0 0.0
  %93 = vmatpush1.msra.mxu0 0.0
  %94 = vmatprep.subr.mxu0 0.0
  %95 = vmatpush1.msra.mxu0 0.0
  %96 = vmatprep.subr.mxu0 0.0
  %97 = vmatpush1.msra.mxu0 0.0
  %98 = vmatprep.subr.mxu0 0.0
  %99 = vmatpush1.msra.mxu0 0.0
  %100 = vmatprep.subr.mxu0 0.0
  %101 = vmatpush1.msra.mxu0 0.0
  %102 = vmatprep.subr.mxu0 0.0
  %103 = vmatpush1.msra.mxu0 0.0
  %104 = vmatprep.subr.mxu0 0.0
  %105 = vmatpush1.msra.mxu0 0.0
  %106 = vmatprep.subr.mxu0 0.0
  %107 = vmatpush1.msra.mxu0 0.0
  %108 = vmatprep.subr.mxu0 0.0
  %109 = vmatpush1.msra.mxu0 0.0
  %110 = vmatprep.subr.mxu0 0.0
  %111 = vmatpush1.msra.mxu0 0.0
  %112 = vmatprep.subr.mxu0 0.0
  %113 = vmatpush1.msra.mxu0 0.0
  %114 = vmatprep.subr.mxu0 0.0
  %115 = vmatpush1.msra.mxu0 0.0
  %116 = vmatprep.subr.mxu0 0.0
  %117 = vmatpush1.msra.mxu0 0.0
  %118 = vmatprep.subr.mxu0 0.0
  %119 = vmatpush1.msra.mxu0 0.0
  %120 = vmatprep.subr.mxu0 0.0
  %121 = vmatpush1.msra.mxu0 0.0
  %122 = vmatprep.subr.mxu0 0.0
  %123 = vmatpush1.msra.mxu0 0.0
  %124 = vmatprep.subr.mxu0 0.0
  %125 = vmatpush1.msra.mxu0 0.0
  %126 = vmatprep.subr.mxu0 0.0
  %127 = vmatpush1.msra.mxu0 0.0
  %128 = vmatprep.subr.mxu0 0.0
  %129 = vmatpush1.msra.mxu0 0.0
  %130 = vmatprep.subr.mxu0 0.0
  %131 = vmatpush1.msra.mxu0 0.0
  %132 = vmatprep.subr.mxu0 0.0
  %133 = vmatpush1.msra.mxu0 0.0
  %134 = vmatprep.subr.mxu0 0.0
  %135 = vmatpush1.msra.mxu0 0.0
  %136 = vmatprep.subr.mxu0 0.0
  %137 = vmatpush1.msra.mxu0 0.0
  %138 = vmatprep.subr.mxu0 0.0
  %139 = vmatpush1.msra.mxu0 0.0
  %140 = vmatprep.subr.mxu0 0.0
  %141 = vmatpush1.msra.mxu0 0.0
  %142 = vmatprep.subr.mxu0 0.0
  %143 = vmatpush1.msra.mxu0 0.0
  %144 = vmatprep.subr.mxu0 0.0
  %145 = vmatpush1.msra.mxu0 0.0
  %146 = vmatprep.subr.mxu0 0.0
  %147 = vmatpush1.msra.mxu0 0.0
  %148 = vmatprep.mubr.f32.mxu0 0.0
  %149 = vmatmul.mubr.f32.gmra.mrb[0].mxu0 %v46
  %v150 = vpop.f32.mrb[0].mxu0
  %v151 = vadd.f32 %v42, %v150
  %v152 = vpop.f32.mrb[0].mxu0
  %153 = vmatprep.mubr.f32.mxu0 0.0
  %154 = vmatmul.mubr.f32.gmra.mrb[0].mxu0 %v49
  %v155 = vpop.f32.mrb[0].mxu0
  %v156 = vadd.f32 %v42, %v155
  %v157 = vpop.f32.mrb[0].mxu0
  %158 = vmatprep.mubr.f32.mxu0 0.0
  %159 = vmatmul.mubr.f32.gmra.mrb[0].mxu0 %v52
  %v160 = vpop.f32.mrb[0].mxu0
  %v161 = vadd.f32 %v42, %v160
  %v162 = vpop.f32.mrb[0].mxu0
  %163 = vmatprep.mubr.f32.mxu0 0.0
  %164 = vmatmul.mubr.f32.gmra.mrb[0].mxu0 %v55
  %v165 = vpop.f32.mrb[0].mxu0
  %v166 = vadd.f32 %v42, %v165
  %v167 = vpop.f32.mrb[0].mxu0
  %168 = vmatprep.mubr.f32.mxu0 0.0
  %169 = vmatmul.mubr.f32.gmra.mrb[0].mxu0 %v58
  %v170 = vpop.f32.mrb[0].mxu0
  %v171 = vadd.f32 %v42, %v170
  %v172 = vpop.f32.mrb[0].mxu0
  %173 = vmatprep.mubr.f32.mxu0 0.0
  %174 = vmatmul.mubr.f32.gmra.mrb[0].mxu0 %v61
  %v175 = vpop.f32.mrb[0].mxu0
  %v176 = vadd.f32 %v42, %v175
  %v177 = vpop.f32.mrb[0].mxu0
  %178 = vmatprep.mubr.f32.mxu0 0.0
  %179 = vmatmul.mubr.f32.gmra.mrb[0].mxu0 %v64
  %v180 = vpop.f32.mrb[0].mxu0
  %v181 = vadd.f32 %v42, %v180
  %v182 = vpop.f32.mrb[0].mxu0
  %183 = vmatprep.mubr.f32.mxu0 0.0
  %184 = vmatmul.mubr.f32.gmra.mrb[0].mxu0 %v67
  %v185 = vpop.f32.mrb[0].mxu0
  %v186 = vadd.f32 %v42, %v185
  %v187 = vpop.f32.mrb[0].mxu0
  %188 = vmatprep.mubr.f32.mxu0 0.0
  %189 = vmatmul.mubr.f32.gmra.mrb[0].mxu0 %v70
  %v190 = vpop.f32.mrb[0].mxu0
  %v191 = vadd.f32 %v42, %v190
  %v192 = vpop.f32.mrb[0].mxu0
  %193 = vmatprep.mubr.f32.mxu0 0.0
  %194 = vmatmul.mubr.f32.gmra.mrb[0].mxu0 %v73
  %v195 = vpop.f32.mrb[0].mxu0
  %v196 = vadd.f32 %v42, %v195
  %v197 = vpop.f32.mrb[0].mxu0
  %198 = vmatprep.mubr.f32.mxu0 0.0
  %199 = vmatmul.mubr.f32.gmra.mrb[0].mxu0 %v76
  %v200 = vpop.f32.mrb[0].mxu0
  %v201 = vadd.f32 %v42, %v200
  %v202 = vpop.f32.mrb[0].mxu0
  %203 = vmatprep.mubr.f32.mxu0 0.0
  %204 = vmatmul.mubr.f32.gmra.mrb[0].mxu0 %v79
  %v205 = vpop.f32.mrb[0].mxu0
  %v206 = vadd.f32 %v42, %v205
  %v207 = vpop.f32.mrb[0].mxu0
  %208 = vmatprep.mubr.f32.mxu0 0.0
  %209 = vmatmul.mubr.f32.gmra.mrb[0].mxu0 %v82
  %v210 = vpop.f32.mrb[0].mxu0
  %v211 = vadd.f32 %v42, %v210
  %v212 = vpop.f32.mrb[0].mxu0
  %213 = vdwg.mxu0
  %v214 = vmax.f32 %v151, 0.0
  %v215 = vmax.f32 %v156, 0.0
  %v216 = vmax.f32 %v161, 0.0
  %v217 = vmax.f32 %v166, 0.0
  %v218 = vmax.f32 %v171, 0.0
  %v219 = vmax.f32 %v176, 0.0
  %v220 = vmax.f32 %v181, 0.0
  %v221 = vmax.f32 %v186, 0.0
  %v222 = vmax.f32 %v191, 0.0
  %v223 = vmax.f32 %v196, 0.0
  %v224 = vmax.f32 %v201, 0.0
  %v225 = vmax.f32 %v206, 0.0
  %v226 = vmax.f32 %v211, 0.0
  %v227 = vld [vmem:[%s3] sm:$0xff]
  %v228 = vld [vmem:[%s3 + $0x8] sm:$0xff]
  %v229 = vld [vmem:[%s3 + $0x10] sm:$0xff]
  %v230 = vld [vmem:[%s3 + $0x18] sm:$0xff]
  %v231 = vld [vmem:[%s3 + $0x20] sm:$0xff]
  %v232 = vld [vmem:[%s3 + $0x28] sm:$0xff]
  %v233 = vld [vmem:[%s3 + $0x30] sm:$0xff]
  %v234 = vld [vmem:[%s3 + $0x38] sm:$0xff]
  %v235 = vld [vmem:[%s3 + $0x40] sm:$0xff]
  %v236 = vld [vmem:[%s3 + $0x48] sm:$0xff]
  %v237 = vld [vmem:[%s3 + $0x50] sm:$0xff]
  %v238 = vld [vmem:[%s3 + $0x58] sm:$0xff]
  %v239 = vld [vmem:[%s3 + $0x60] sm:$0xff]
  %v240 = vld [vmem:[%s3 + $0x68] sm:$0xff]
  %v241 = vld [vmem:[%s3 + $0x70] sm:$0xff]
  %v242 = vld [vmem:[%s3 + $0x78] sm:$0xff]
  %v243 = vld [vmem:[%s4] sm:$0x1]
  %v245 = vlaneseq
  %v246 = vshrl.u32 %v245, 7
  %v247 = vsub.s32 0, %v246
  %v248 = vrot.slane %v243, %v247
  %250 = vmatprep.subr.mxu0 0.0
  %251 = vmatpush1.msra.mxu0 %v227
  %252 = vmatprep.subr.mxu0 0.0
  %253 = vmatpush1.msra.mxu0 %v228
  %254 = vmatprep.subr.mxu0 0.0
  %255 = vmatpush1.msra.mxu0 %v229
  %256 = vmatprep.subr.mxu0 0.0
  %257 = vmatpush1.msra.mxu0 %v230
  %258 = vmatprep.subr.mxu0 0.0
  %259 = vmatpush1.msra.mxu0 %v231
  %260 = vmatprep.subr.mxu0 0.0
  %261 = vmatpush1.msra.mxu0 %v232
  %262 = vmatprep.subr.mxu0 0.0
  %263 = vmatpush1.msra.mxu0 %v233
  %264 = vmatprep.subr.mxu0 0.0
  %265 = vmatpush1.msra.mxu0 %v234
  %266 = vmatprep.subr.mxu0 0.0
  %267 = vmatpush1.msra.mxu0 %v235
  %268 = vmatprep.subr.mxu0 0.0
  %269 = vmatpush1.msra.mxu0 %v236
  %270 = vmatprep.subr.mxu0 0.0
  %271 = vmatpush1.msra.mxu0 %v237
  %272 = vmatprep.subr.mxu0 0.0
  %273 = vmatpush1.msra.mxu0 %v238
  %274 = vmatprep.subr.mxu0 0.0
  %275 = vmatpush1.msra.mxu0 %v239
  %276 = vmatprep.subr.mxu0 0.0
  %277 = vmatpush1.msra.mxu0 %v240
  %278 = vmatprep.subr.mxu0 0.0
  %279 = vmatpush1.msra.mxu0 %v241
  %280 = vmatprep.subr.mxu0 0.0
  %281 = vmatpush1.msra.mxu0 %v242
  %282 = vmatprep.subr.mxu0 0.0
  %283 = vmatpush1.msra.mxu0 0.0
  %284 = vmatprep.subr.mxu0 0.0
  %285 = vmatpush1.msra.mxu0 0.0
  %286 = vmatprep.subr.mxu0 0.0
  %287 = vmatpush1.msra.mxu0 0.0
  %288 = vmatprep.subr.mxu0 0.0
  %289 = vmatpush1.msra.mxu0 0.0
  %290 = vmatprep.subr.mxu0 0.0
  %291 = vmatpush1.msra.mxu0 0.0
  %292 = vmatprep.subr.mxu0 0.0
  %293 = vmatpush1.msra.mxu0 0.0
  %294 = vmatprep.subr.mxu0 0.0
  %295 = vmatpush1.msra.mxu0 0.0
  %296 = vmatprep.subr.mxu0 0.0
  %297 = vmatpush1.msra.mxu0 0.0
  %298 = vmatprep.subr.mxu0 0.0
  %299 = vmatpush1.msra.mxu0 0.0
  %300 = vmatprep.subr.mxu0 0.0
  %301 = vmatpush1.msra.mxu0 0.0
  %302 = vmatprep.subr.mxu0 0.0
  %303 = vmatpush1.msra.mxu0 0.0
  %304 = vmatprep.subr.mxu0 0.0
  %305 = vmatpush1.msra.mxu0 0.0
  %306 = vmatprep.subr.mxu0 0.0
  %307 = vmatpush1.msra.mxu0 0.0
  %308 = vmatprep.subr.mxu0 0.0
  %309 = vmatpush1.msra.mxu0 0.0
  %310 = vmatprep.subr.mxu0 0.0
  %311 = vmatpush1.msra.mxu0 0.0
  %312 = vmatprep.subr.mxu0 0.0
  %313 = vmatpush1.msra.mxu0 0.0
  %314 = vmatprep.mubr.f32.mxu0 0.0
  %315 = vmatmul.mubr.f32.gmra.mrb[0].mxu0 %v214
  %v316 = vpop.f32.mrb[0].mxu0
  %v317 = vadd.f32 %v248, %v316
  %v318 = vpop.f32.mrb[0].mxu0
  %319 = vmatprep.mubr.f32.mxu0 0.0
  %320 = vmatmul.mubr.f32.gmra.mrb[0].mxu0 %v215
  %v321 = vpop.f32.mrb[0].mxu0
  %v322 = vadd.f32 %v248, %v321
  %v323 = vpop.f32.mrb[0].mxu0
  %324 = vmatprep.mubr.f32.mxu0 0.0
  %325 = vmatmul.mubr.f32.gmra.mrb[0].mxu0 %v216
  %v326 = vpop.f32.mrb[0].mxu0
  %v327 = vadd.f32 %v248, %v326
  %v328 = vpop.f32.mrb[0].mxu0
  %329 = vmatprep.mubr.f32.mxu0 0.0
  %330 = vmatmul.mubr.f32.gmra.mrb[0].mxu0 %v217
  %v331 = vpop.f32.mrb[0].mxu0
  %v332 = vadd.f32 %v248, %v331
  %v333 = vpop.f32.mrb[0].mxu0
  %334 = vmatprep.mubr.f32.mxu0 0.0
  %335 = vmatmul.mubr.f32.gmra.mrb[0].mxu0 %v218
  %v336 = vpop.f32.mrb[0].mxu0
  %v337 = vadd.f32 %v248, %v336
  %v338 = vpop.f32.mrb[0].mxu0
  %339 = vmatprep.mubr.f32.mxu0 0.0
  %340 = vmatmul.mubr.f32.gmra.mrb[0].mxu0 %v219
  %v341 = vpop.f32.mrb[0].mxu0
  %v342 = vadd.f32 %v248, %v341
  %v343 = vpop.f32.mrb[0].mxu0
  %344 = vmatprep.mubr.f32.mxu0 0.0
  %345 = vmatmul.mubr.f32.gmra.mrb[0].mxu0 %v220
  %v346 = vpop.f32.mrb[0].mxu0
  %v347 = vadd.f32 %v248, %v346
  %v348 = vpop.f32.mrb[0].mxu0
  %349 = vmatprep.mubr.f32.mxu0 0.0
  %350 = vmatmul.mubr.f32.gmra.mrb[0].mxu0 %v221
  %v351 = vpop.f32.mrb[0].mxu0
  %v352 = vadd.f32 %v248, %v351
  %v353 = vpop.f32.mrb[0].mxu0
  %354 = vmatprep.mubr.f32.mxu0 0.0
  %355 = vmatmul.mubr.f32.gmra.mrb[0].mxu0 %v222
  %v356 = vpop.f32.mrb[0].mxu0
  %v357 = vadd.f32 %v248, %v356
  %v358 = vpop.f32.mrb[0].mxu0
  %359 = vmatprep.mubr.f32.mxu0 0.0
  %360 = vmatmul.mubr.f32.gmra.mrb[0].mxu0 %v223
  %v361 = vpop.f32.mrb[0].mxu0
  %v362 = vadd.f32 %v248, %v361
  %v363 = vpop.f32.mrb[0].mxu0
  %364 = vmatprep.mubr.f32.mxu0 0.0
  %365 = vmatmul.mubr.f32.gmra.mrb[0].mxu0 %v224
  %v366 = vpop.f32.mrb[0].mxu0
  %v367 = vadd.f32 %v248, %v366
  %v368 = vpop.f32.mrb[0].mxu0
  %369 = vmatprep.mubr.f32.mxu0 0.0
  %370 = vmatmul.mubr.f32.gmra.mrb[0].mxu0 %v225
  %v371 = vpop.f32.mrb[0].mxu0
  %v372 = vadd.f32 %v248, %v371
  %v373 = vpop.f32.mrb[0].mxu0
  %374 = vmatprep.mubr.f32.mxu0 0.0
  %375 = vmatmul.mubr.f32.gmra.mrb[0].mxu0 %v226
  %v376 = vpop.f32.mrb[0].mxu0
  %v377 = vadd.f32 %v248, %v376
  %v378 = vpop.f32.mrb[0].mxu0
  %379 = vdwg.mxu0
  %vm380 = vcmask 23552
  %381 = vst.msk [vmem:[%s5] sm:$0xff] %vm380, %v317
  %382 = vst.msk [vmem:[%s5 + $0x8] sm:$0xff] %vm380, %v322
  %383 = vst.msk [vmem:[%s5 + $0x10] sm:$0xff] %vm380, %v327
  %384 = vst.msk [vmem:[%s5 + $0x18] sm:$0xff] %vm380, %v332
  %385 = vst.msk [vmem:[%s5 + $0x20] sm:$0xff] %vm380, %v337
  %386 = vst.msk [vmem:[%s5 + $0x28] sm:$0xff] %vm380, %v342
  %387 = vst.msk [vmem:[%s5 + $0x30] sm:$0xff] %vm380, %v347
  %388 = vst.msk [vmem:[%s5 + $0x38] sm:$0xff] %vm380, %v352
  %389 = vst.msk [vmem:[%s5 + $0x40] sm:$0xff] %vm380, %v357
  %390 = vst.msk [vmem:[%s5 + $0x48] sm:$0xff] %vm380, %v362
  %391 = vst.msk [vmem:[%s5 + $0x50] sm:$0xff] %vm380, %v367
  %392 = vst.msk [vmem:[%s5 + $0x58] sm:$0xff] %vm380, %v372
  %vm393 = vcmask 19456
  %394 = vst.msk [vmem:[%s5 + $0x60] sm:$0xf] %vm393, %v377
  // Predicated region
  $region22: #{tpu_custom_call.1} parent=0 // pred_check
    _
  $region23: #{tpu_custom_call.1} parent=0 // pred_check_branch
    %396 = sbr.rel (0) target = $region25
  $region24: #{tpu_custom_call.1} parent=0 // pred_region
    _
  $region25: #{tpu_custom_call.1} parent=0 // pred_fallthru
    _
  // Predicated region
  $region26: #{tpu_custom_call.1} parent=0 // pred_check
    _
  $region27: #{tpu_custom_call.1} parent=0 // pred_check_branch
    %398 = sbr.rel (0) target = $region29
  $region28: #{tpu_custom_call.1} parent=0 // pred_region
    _
  $region29: #{tpu_custom_call.1} parent=0 // pred_fallthru
    _

</llo_original>
